<compile_context>
chip_gen: v7x
topology: tpu7x:2x2x1
jax: 0.10.0
libtpu: 0.0.40
codegen_flags: <defaults>
</compile_context>

<pallas_src>
import functools
import math

import jax
import jax.numpy as jnp
from jax import lax
from jax.experimental import pallas as pl
from jax.experimental.pallas import tpu as pltpu

_LOG2 = math.log(2.0)


def _dhn_loss_kernel(u_ref, y_ref, U_ref, Y_ref, out_ref,
                     uh_ref, yc_ref, acc_ref, *,
                     alpha, n_valid, b, tile_n, needs_mask):
    """Grid = (split, tiles_per_split).

    Axis 0 ("parallel") splits the num_train reduction across TensorCores,
    each split writing its own partial-loss output block.  Axis 1
    ("arbitrary") streams feature-major U/Y tiles (lane axis = num_train),
    accumulating into a lane-dense (b, tile_n) f32 scratch; the single
    cross-lane reduce + normalization + quantization run once in finalize.
    """
    c = pl.program_id(0)
    k = pl.program_id(1)
    nk = pl.num_programs(1)

    @pl.when(k == 0)
    def _init():
        acc_ref[...] = jnp.zeros_like(acc_ref)
        # Hoisted per-step work: 0.5 scale + compute-dtype casts of the tiny
        # resident (b, bit) / (b, n_class) blocks.
        uh_ref[...] = (u_ref[...] * 0.5).astype(uh_ref.dtype)
        yc_ref[...] = y_ref[...].astype(yc_ref.dtype)

    # inner_product = 0.5 * u @ U.T ; U streamed feature-major (bit, tile_n),
    # so contract on (1, 0) -- no transpose, feeds the MXU directly.
    ip = lax.dot_general(uh_ref[...], U_ref[...],
                         dimension_numbers=(((1,), (0,)), ((), ())),
                         preferred_element_type=jnp.float32)
    sy = lax.dot_general(yc_ref[...], Y_ref[...],
                         dimension_numbers=(((1,), (0,)), ((), ())),
                         preferred_element_type=jnp.float32)
    s = (sy > 0.0).astype(jnp.float32)

    # log(1 + exp(-|ip|)) + max(ip, 0) - s * ip   (numerically stable softplus)
    ll = jnp.log1p(jnp.exp(-jnp.abs(ip))) + jnp.maximum(ip, 0.0) - s * ip

    if needs_mask:
        # Zero columns beyond num_train (partial last tile and fully
        # out-of-range clamped tiles).  Must stay before the accumulate.
        col = (c * nk + k) * tile_n + lax.broadcasted_iota(jnp.int32, ll.shape, 1)
        ll = jnp.where(col < n_valid, ll, 0.0)

    acc_ref[...] += ll        # lane-preserving VPU accumulate, no per-step XLU

    @pl.when(k == nk - 1)
    def _finalize():
        likelihood = jnp.sum(acc_ref[...]) / jnp.float32(b * n_valid)
        # quantization: alpha * mean(log(cosh(|u| - 1))), overflow-safe form
        # log(cosh(x)) = |x| + log1p(exp(-2|x|)) - log(2)
        x = jnp.abs(jnp.abs(u_ref[...]) - 1.0)
        quant = alpha * jnp.mean(x + jnp.log1p(jnp.exp(-2.0 * x)) - _LOG2)
        partial = likelihood + jnp.where(c == 0, quant, 0.0)
        out_ref[...] = jnp.full(out_ref.shape, partial, dtype=out_ref.dtype)


def _vmem_plan():
    """(tile VMEM budget, vmem_limit_bytes, max tile_n) per TPU generation."""
    phys = 64 << 20
    try:
        phys = int(getattr(pltpu.get_tpu_info(), "vmem_capacity_bytes", phys)) or phys
    except Exception:
        pass
    if phys >= (128 << 20):            # v5e / v6e: 128 MiB physical VMEM
        return 48 << 20, 96 << 20, 65536
    return 20 << 20, 30 << 20, 32768   # v7x (64 MiB physical) / unknown


def _pick_tile_n(n_total, bit, n_class, itemsize, b, budget, max_tile):
    """Largest num_train (lane-axis) tile whose double-buffered U/Y tiles plus
    the (b, tile_n) f32 accumulator fit under `budget`."""
    col_bytes = 2 * (bit + n_class) * itemsize + 4 * b
    cap = (budget // col_bytes) // 128 * 128
    cap = max(128, min(max_tile, cap))
    if n_total <= cap:
        return n_total                 # single full tile
    return cap                         # multiple of 128 (lane axis)


def dhn_loss(u, y, U_t, Y_t, ind, *, alpha, tile_n=None, num_splits=2):
    """JAX/Pallas equivalent of DHNLoss.forward.

    Persistent buffers are kept FEATURE-MAJOR so the streamed lane axis is
    num_train:
        U_t: (bit, num_train), Y_t: (n_class, num_train)
    They are streamed in their stored dtype (float32 or bfloat16) -- no
    per-call conversion pass.  Returns (loss, U_t_new, Y_t_new).
    """
    u32 = u.astype(jnp.float32)
    y32 = y.astype(jnp.float32)
    # Glue: scatter-update persistent buffers (PyTorch: self.U[ind]=u, self.Y[ind]=y).
    U_new = U_t.at[:, ind].set(u32.T.astype(U_t.dtype))
    Y_new = Y_t.at[:, ind].set(y32.T.astype(Y_t.dtype))

    b, bit = u32.shape
    n_class = y32.shape[1]
    n_total = U_new.shape[1]
    cdt = U_new.dtype
    itemsize = jnp.dtype(cdt).itemsize

    budget, vmem_limit, max_tile = _vmem_plan()
    if tile_n is None:
        tile_n = _pick_tile_n(n_total, bit, n_class, itemsize, b, budget, max_tile)
    nt = pl.cdiv(n_total, tile_n)          # no jnp.pad: partial tiles are masked
    split = max(1, min(num_splits, nt))    # v7x: split reduction across the 2 TCs
    nk = pl.cdiv(nt, split)
    needs_mask = (split * nk * tile_n != n_total)

    def uy_map(c, k):
        # Clamp so fully out-of-range logical tiles (when split*nk > nt) re-read
        # the last valid tile; their contribution is zeroed by the in-kernel mask.
        return (0, jnp.minimum(c * nk + k, nt - 1))

    kernel = functools.partial(
        _dhn_loss_kernel, alpha=float(alpha), n_valid=n_total, b=b,
        tile_n=tile_n, needs_mask=needs_mask)

    cost = pl.CostEstimate(
        flops=2 * b * (bit + n_class) * n_total,
        transcendentals=2 * b * n_total + 2 * b * bit,
        bytes_accessed=(n_total * (bit + n_class) * itemsize
                        + b * (bit + n_class) * 4 + split * 8 * 128 * 4),
    )

    # TODO(synk): for strictly one-hot datasets, replace the Y stream + matmul
    # with an int32 label compare; sweep pipeline_mode=pl.Buffered(3) on the
    # U/Y specs once tile_n is fixed for the deployment shape.
    out = pl.pallas_call(
        kernel,
        out_shape=jax.ShapeDtypeStruct((split * 8, 128), jnp.float32),
        grid_spec=pltpu.PrefetchScalarGridSpec(
            num_scalar_prefetch=0,
            grid=(split, nk),
            in_specs=[
                pl.BlockSpec((b, bit), lambda c, k: (0, 0)),        # u (resident)
                pl.BlockSpec((b, n_class), lambda c, k: (0, 0)),    # y (resident)
                pl.BlockSpec((bit, tile_n), uy_map),                # U tile (feature-major)
                pl.BlockSpec((n_class, tile_n), uy_map),            # Y tile (feature-major)
            ],
            out_specs=pl.BlockSpec((8, 128), lambda c, k: (c, 0)),  # per-split partial
            scratch_shapes=[
                pltpu.VMEM((b, bit), cdt),            # 0.5*u in compute dtype
                pltpu.VMEM((b, n_class), cdt),        # y in compute dtype
                pltpu.VMEM((b, tile_n), jnp.float32), # lane-dense accumulator
            ],
        ),
        compiler_params=pltpu.CompilerParams(
            dimension_semantics=("parallel", "arbitrary"),
            vmem_limit_bytes=vmem_limit,
        ),
        cost_estimate=cost,
    )(u32, y32, U_new, Y_new)

    loss = jnp.sum(out[::8, 0])            # sum the per-split partial losses
    return loss, U_new, Y_new


def dhn_loss_ref(u, y, U, Y, ind, *, alpha):
    """Pure-JAX reference with the original row-major layout (mirrors PyTorch)."""
    U_new = U.at[ind, :].set(u)
    Y_new = Y.at[ind, :].set(y)
    s = (y @ Y_new.T > 0).astype(jnp.float32)
    ip = u @ U_new.T * 0.5
    ll = jnp.log1p(jnp.exp(-jnp.abs(ip))) + jnp.maximum(ip, 0.0) - s * ip
    quant = alpha * jnp.mean(jnp.log(jnp.cosh(jnp.abs(u) - 1.0)))
    return jnp.mean(ll) + quant


def _make_inputs(key, num_train, bit, n_class, batch):
    k_u, k_y, k_ind = jax.random.split(key, 3)
    u = jax.random.normal(k_u, (batch, bit), dtype=jnp.float32)
    labels = jax.random.randint(k_y, (batch,), 0, n_class)
    y = jax.nn.one_hot(labels, n_class, dtype=jnp.float32)
    ind = jax.random.permutation(k_ind, num_train)[:batch]
    U = jnp.zeros((num_train, bit), dtype=jnp.float32)
    Y = jnp.zeros((num_train, n_class), dtype=jnp.float32)
    return u, y, U, Y, ind


if __name__ == "__main__":
    alpha = 0.1
    key = jax.random.PRNGKey(0)
    k1, k2 = jax.random.split(key)

    # Case 1: small config -> single full tile, no split.
    u, y, U, Y, ind = _make_inputs(k1, num_train=64, bit=32, n_class=16, batch=8)
    loss, _, _ = dhn_loss(u, y, U.T, Y.T, ind, alpha=alpha)
    loss = jax.block_until_ready(loss)
    loss_ref = jax.block_until_ready(dhn_loss_ref(u, y, U, Y, ind, alpha=alpha))
    assert jnp.allclose(loss, loss_ref, rtol=1e-5, atol=1e-5), (loss, loss_ref)

    # Case 2: forced tile_n=128 on num_train=300 -> 2-way split, masked partial
    # tile plus one clamped fully-out-of-range tile (no jnp.pad copies).
    u2, y2, U2, Y2, ind2 = _make_inputs(
        k2, num_train=300, bit=32, n_class=16, batch=8)
    loss2, _, _ = dhn_loss(u2, y2, U2.T, Y2.T, ind2, alpha=alpha, tile_n=128)
    loss2 = jax.block_until_ready(loss2)
    loss2_ref = jax.block_until_ready(
        dhn_loss_ref(u2, y2, U2, Y2, ind2, alpha=alpha))
    assert jnp.allclose(loss2, loss2_ref, rtol=1e-5, atol=1e-5), (loss2, loss2_ref)

    # Case 3: persistent bf16 buffers (halved HBM traffic, no per-call cast pass).
    loss3, _, _ = dhn_loss(u, y, U.T.astype(jnp.bfloat16),
                           Y.T.astype(jnp.bfloat16), ind, alpha=alpha)
    loss3 = jax.block_until_ready(loss3)
    assert jnp.allclose(loss3, loss_ref, rtol=2e-2, atol=2e-2), (loss3, loss_ref)

    print("KERNEL_OK")
</pallas_src>

<mosaic_0001>
module attributes {stable_mosaic.version = 11 : i64} {
  func.func @_dhn_loss_kernel(%arg0: i32, %arg1: i32, %arg2: memref<8x32xf32, #tpu.memory_space<vmem>>, %arg3: memref<8x16xf32, #tpu.memory_space<vmem>>, %arg4: memref<32x64xf32, #tpu.memory_space<vmem>>, %arg5: memref<16x64xf32, #tpu.memory_space<vmem>>, %arg6: memref<8x128xf32, #tpu.memory_space<vmem>>, %arg7: memref<8x32xf32, #tpu.memory_space<vmem>>, %arg8: memref<8x16xf32, #tpu.memory_space<vmem>>, %arg9: memref<8x64xf32, #tpu.memory_space<vmem>>) attributes {dimension_semantics = [#tpu.dimension_semantics<parallel>, #tpu.dimension_semantics<arbitrary>], iteration_bounds = array<i64: 1, 1>, scalar_prefetch = 0 : i64, scratch_operands = 3 : i64, tpu.core_type = #tpu.core_type<tc>, window_params = [{pipeline_mode = #tpu.pipeline_mode<synchronous>, transform_indices = @transform_0, window_bounds = array<i64: 8, 32>}, {pipeline_mode = #tpu.pipeline_mode<synchronous>, transform_indices = @transform_1, window_bounds = array<i64: 8, 16>}, {transform_indices = @transform_2, window_bounds = array<i64: 32, 64>}, {transform_indices = @transform_3, window_bounds = array<i64: 16, 64>}, {transform_indices = @transform_4, window_bounds = array<i64: 8, 128>}]} {
    %c0_i32 = arith.constant 0 : i32
    %0 = arith.cmpi eq, %arg1, %c0_i32 : i32
    %1 = arith.extui %0 : i1 to i32
    %c0_i32_0 = arith.constant 0 : i32
    %2 = arith.cmpi ne, %1, %c0_i32_0 : i32
    scf.if %2 {
      %cst_18 = arith.constant 0.000000e+00 : f32
      %29 = vector.broadcast %cst_18 : f32 to vector<8x64xf32>
      %c0_19 = arith.constant 0 : index
      %c0_20 = arith.constant 0 : index
      %30 = vector.load %arg9[%c0_19, %c0_20] : memref<8x64xf32, #tpu.memory_space<vmem>>, vector<8x64xf32>
      tpu.vector_store %arg9[%c0_19, %c0_20], %29 {strides = array<i32>} : memref<8x64xf32, #tpu.memory_space<vmem>>, vector<8x64xf32>,
      %c0_21 = arith.constant 0 : index
      %c0_22 = arith.constant 0 : index
      %31 = vector.load %arg2[%c0_21, %c0_22] : memref<8x32xf32, #tpu.memory_space<vmem>>, vector<8x32xf32>
      %cst_23 = arith.constant 5.000000e-01 : f32
      %32 = vector.broadcast %cst_23 : f32 to vector<8x32xf32>
      %33 = arith.mulf %31, %32 : vector<8x32xf32>
      %c0_24 = arith.constant 0 : index
      %c0_25 = arith.constant 0 : index
      %34 = vector.load %arg7[%c0_24, %c0_25] : memref<8x32xf32, #tpu.memory_space<vmem>>, vector<8x32xf32>
      tpu.vector_store %arg7[%c0_24, %c0_25], %33 {strides = array<i32>} : memref<8x32xf32, #tpu.memory_space<vmem>>, vector<8x32xf32>,
      %c0_26 = arith.constant 0 : index
      %c0_27 = arith.constant 0 : index
      %35 = vector.load %arg3[%c0_26, %c0_27] : memref<8x16xf32, #tpu.memory_space<vmem>>, vector<8x16xf32>
      %c0_28 = arith.constant 0 : index
      %c0_29 = arith.constant 0 : index
      %36 = vector.load %arg8[%c0_28, %c0_29] : memref<8x16xf32, #tpu.memory_space<vmem>>, vector<8x16xf32>
      tpu.vector_store %arg8[%c0_28, %c0_29], %35 {strides = array<i32>} : memref<8x16xf32, #tpu.memory_space<vmem>>, vector<8x16xf32>,
    } else {
    }
    %c0 = arith.constant 0 : index
    %c0_1 = arith.constant 0 : index
    %3 = vector.load %arg7[%c0, %c0_1] : memref<8x32xf32, #tpu.memory_space<vmem>>, vector<8x32xf32>
    %c0_2 = arith.constant 0 : index
    %c0_3 = arith.constant 0 : index
    %4 = vector.load %arg4[%c0_2, %c0_3] : memref<32x64xf32, #tpu.memory_space<vmem>>, vector<32x64xf32>
    %cst = arith.constant dense<0.000000e+00> : vector<8x64xf32>
    %5 = tpu.matmul %3, %4, %cst {dimension_numbers = #tpu.dot_dimension_numbers<[1], [0], [0], [1], [0, 0, 1, 1], [], []>} : vector<8x32xf32>, vector<32x64xf32>, vector<8x64xf32> -> vector<8x64xf32>
    %c0_4 = arith.constant 0 : index
    %c0_5 = arith.constant 0 : index
    %6 = vector.load %arg8[%c0_4, %c0_5] : memref<8x16xf32, #tpu.memory_space<vmem>>, vector<8x16xf32>
    %c0_6 = arith.constant 0 : index
    %c0_7 = arith.constant 0 : index
    %7 = vector.load %arg5[%c0_6, %c0_7] : memref<16x64xf32, #tpu.memory_space<vmem>>, vector<16x64xf32>
    %cst_8 = arith.constant dense<0.000000e+00> : vector<8x64xf32>
    %8 = tpu.matmul %6, %7, %cst_8 {dimension_numbers = #tpu.dot_dimension_numbers<[1], [0], [0], [1], [0, 0, 1, 1], [], []>} : vector<8x16xf32>, vector<16x64xf32>, vector<8x64xf32> -> vector<8x64xf32>
    %cst_9 = arith.constant 0.000000e+00 : f32
    %9 = vector.broadcast %cst_9 : f32 to vector<8x64xf32>
    %10 = arith.cmpf ogt, %8, %9 : vector<8x64xf32>
    %11 = arith.extui %10 : vector<8x64xi1> to vector<8x64xi32>
    %12 = arith.sitofp %11 : vector<8x64xi32> to vector<8x64xf32>
    %13 = math.absf %5 : vector<8x64xf32>
    %cst_10 = arith.constant 0.000000e+00 : f32
    %14 = vector.broadcast %cst_10 : f32 to vector<8x64xf32>
    %15 = arith.subf %14, %13 : vector<8x64xf32>
    %16 = math.exp %15 : vector<8x64xf32>
    %17 = math.log1p %16 : vector<8x64xf32>
    %cst_11 = arith.constant 0.000000e+00 : f32
    %18 = vector.broadcast %cst_11 : f32 to vector<8x64xf32>
    %19 = arith.maximumf %5, %18 : vector<8x64xf32>
    %20 = arith.addf %17, %19 : vector<8x64xf32>
    %21 = arith.mulf %12, %5 : vector<8x64xf32>
    %22 = arith.subf %20, %21 : vector<8x64xf32>
    %c0_12 = arith.constant 0 : index
    %c0_13 = arith.constant 0 : index
    %23 = vector.load %arg9[%c0_12, %c0_13] : memref<8x64xf32, #tpu.memory_space<vmem>>, vector<8x64xf32>
    %24 = arith.addf %23, %22 : vector<8x64xf32>
    %c0_14 = arith.constant 0 : index
    %c0_15 = arith.constant 0 : index
    %25 = vector.load %arg9[%c0_14, %c0_15] : memref<8x64xf32, #tpu.memory_space<vmem>>, vector<8x64xf32>
    tpu.vector_store %arg9[%c0_14, %c0_15], %24 {strides = array<i32>} : memref<8x64xf32, #tpu.memory_space<vmem>>, vector<8x64xf32>,
    %c0_i32_16 = arith.constant 0 : i32
    %26 = arith.cmpi eq, %arg1, %c0_i32_16 : i32
    %27 = arith.extui %26 : i1 to i32
    %c0_i32_17 = arith.constant 0 : i32
    %28 = arith.cmpi ne, %27, %c0_i32_17 : i32
    scf.if %28 {
      %c0_18 = arith.constant 0 : index
      %c0_19 = arith.constant 0 : index
      %29 = vector.load %arg9[%c0_18, %c0_19] : memref<8x64xf32, #tpu.memory_space<vmem>>, vector<8x64xf32>
      %30 = vector.shape_cast %29 : vector<8x64xf32> to vector<1x8x64xf32>
      %cst_20 = arith.constant dense<0.000000e+00> : vector<1xf32>
      %31 = vector.multi_reduction <add>, %30, %cst_20 [1, 2] : vector<1x8x64xf32> to vector<1xf32>
      %32 = vector.shape_cast %31 : vector<1xf32> to vector<1x1x1xf32>
      %33 = vector.extract %32[0, 0, 0] : f32 from vector<1x1x1xf32>
      %cst_21 = arith.constant 5.120000e+02 : f32
      %34 = arith.divf %33, %cst_21 : f32
      %c0_22 = arith.constant 0 : index
      %c0_23 = arith.constant 0 : index
      %35 = vector.load %arg2[%c0_22, %c0_23] : memref<8x32xf32, #tpu.memory_space<vmem>>, vector<8x32xf32>
      %36 = math.absf %35 : vector<8x32xf32>
      %cst_24 = arith.constant 1.000000e+00 : f32
      %37 = vector.broadcast %cst_24 : f32 to vector<8x32xf32>
      %38 = arith.subf %36, %37 : vector<8x32xf32>
      %39 = math.absf %38 : vector<8x32xf32>
      %cst_25 = arith.constant -2.000000e+00 : f32
      %40 = vector.broadcast %cst_25 : f32 to vector<8x32xf32>
      %41 = arith.mulf %40, %39 : vector<8x32xf32>
      %42 = math.exp %41 : vector<8x32xf32>
      %43 = math.log1p %42 : vector<8x32xf32>
      %44 = arith.addf %39, %43 : vector<8x32xf32>
      %cst_26 = arith.constant 0.693147182 : f32
      %45 = vector.broadcast %cst_26 : f32 to vector<8x32xf32>
      %46 = arith.subf %44, %45 : vector<8x32xf32>
      %47 = vector.shape_cast %46 : vector<8x32xf32> to vector<1x8x32xf32>
      %cst_27 = arith.constant dense<0.000000e+00> : vector<1xf32>
      %48 = vector.multi_reduction <add>, %47, %cst_27 [1, 2] : vector<1x8x32xf32> to vector<1xf32>
      %49 = vector.shape_cast %48 : vector<1xf32> to vector<1x1x1xf32>
      %50 = vector.extract %49[0, 0, 0] : f32 from vector<1x1x1xf32>
      %cst_28 = arith.constant 2.560000e+02 : f32
      %51 = arith.divf %50, %cst_28 : f32
      %cst_29 = arith.constant 1.000000e-01 : f32
      %52 = arith.mulf %cst_29, %51 : f32
      %c0_i32_30 = arith.constant 0 : i32
      %53 = arith.cmpi eq, %arg0, %c0_i32_30 : i32
      %cst_31 = arith.constant 0.000000e+00 : f32
      %54 = arith.select %53, %52, %cst_31 : f32
      %55 = arith.addf %34, %54 : f32
      %56 = vector.broadcast %55 : f32 to vector<8x128xf32>
      %c0_32 = arith.constant 0 : index
      %c0_33 = arith.constant 0 : index
      %57 = vector.load %arg6[%c0_32, %c0_33] : memref<8x128xf32, #tpu.memory_space<vmem>>, vector<8x128xf32>
      tpu.vector_store %arg6[%c0_32, %c0_33], %56 {strides = array<i32>} : memref<8x128xf32, #tpu.memory_space<vmem>>, vector<8x128xf32>,
    } else {
    }
    return
  }
  func.func @transform_0(%arg0: i32, %arg1: i32) -> (i32, i32) {
    %c0_i32 = arith.constant 0 : i32
    %c0_i32_0 = arith.constant 0 : i32
    %c0_i32_1 = arith.constant 0 : i32
    return %c0_i32, %c0_i32_0 : i32, i32
  }
  func.func @transform_1(%arg0: i32, %arg1: i32) -> (i32, i32) {
    %c0_i32 = arith.constant 0 : i32
    %c0_i32_0 = arith.constant 0 : i32
    %c0_i32_1 = arith.constant 0 : i32
    return %c0_i32, %c0_i32_0 : i32, i32
  }
  func.func @transform_2(%arg0: i32, %arg1: i32) -> (i32, i32) {
    %c1_i32 = arith.constant 1 : i32
    %0 = arith.muli %arg0, %c1_i32 : i32
    %1 = arith.addi %0, %arg1 : i32
    %c0_i32 = arith.constant 0 : i32
    %2 = arith.minsi %1, %c0_i32 : i32
    %c0_i32_0 = arith.constant 0 : i32
    %c0_i32_1 = arith.constant 0 : i32
    return %c0_i32_0, %2 : i32, i32
  }
  func.func @transform_3(%arg0: i32, %arg1: i32) -> (i32, i32) {
    %c1_i32 = arith.constant 1 : i32
    %0 = arith.muli %arg0, %c1_i32 : i32
    %1 = arith.addi %0, %arg1 : i32
    %c0_i32 = arith.constant 0 : i32
    %2 = arith.minsi %1, %c0_i32 : i32
    %c0_i32_0 = arith.constant 0 : i32
    %c0_i32_1 = arith.constant 0 : i32
    return %c0_i32_0, %2 : i32, i32
  }
  func.func @transform_4(%arg0: i32, %arg1: i32) -> (i32, i32) {
    %c0_i32 = arith.constant 0 : i32
    %c0_i32_0 = arith.constant 0 : i32
    return %arg0, %c0_i32 : i32, i32
  }
}

</mosaic_0001>

<llo_original>
// kernel: tpu_custom_call.1
$region0: #{tpu_custom_call.1}
  #allocation0 [shape = 'u32[]', space=smem, size = 0x4, offset = 0x4, fixed_abs, tag = 'smem constant byte address 0x4 - core index']
  #allocation1 [shape = 'u32[144,128]{1,0:T(1,128)}', space=vmem, size = 0x12000, scoped, tag = 'internal scratch']
  #allocation2 [shape = 'f32[8,32]{1,0:T(8,128)}', space=vmem, size = 0x1000, scoped, tag = 'scratch operand']
  #allocation3 [shape = 'f32[8,16]{1,0:T(8,128)}', space=vmem, size = 0x1000, scoped, tag = 'scratch operand']
  #allocation4 [shape = 'f32[8,64]{1,0:T(8,128)}', space=vmem, size = 0x1000, scoped, tag = 'scratch operand']
  %s0 = inlined_call_operand.hbm [shape: f32[8,32], index: 0, kind: input, shape index: {}]
  %s1 = inlined_call_operand.hbm [shape: f32[8,16], index: 1, kind: input, shape index: {}]
  %s2 = inlined_call_operand.hbm [shape: f32[32,64], index: 2, kind: input, shape index: {}]
  %s3 = inlined_call_operand.hbm [shape: f32[16,64], index: 3, kind: input, shape index: {}]
  %s4 = inlined_call_operand.hbm [shape: f32[8,128], index: 4, kind: output, shape index: {}]
  %s5 = sld [smem:[#allocation0]]
  $region50: #{tpu_custom_call.1} parent=0
    _
  %s7 = ssub.s32 1, %s5
  %s8 = scalar_select 0, %s7, %s5
  $region1: #{tpu_custom_call.1} parent=0
    #allocation5 [shape = 'u8[4096]{0}', space=vmem, size = 0x1000, scoped, tag = 'input window, operand 0, single buffered']
    #allocation6 [shape = 's32[1]{0}', space=sflag, size = 0x4, scoped, tag = 'scoped memory for tpu_custom_call.1']
    #allocation7 [shape = 's32[1]{0}', space=sflag, size = 0x4, scoped, tag = 'scoped memory for tpu_custom_call.1']
    #allocation8 [shape = 'u8[4096]{0}', space=vmem, size = 0x1000, scoped, tag = 'input window, operand 1, single buffered']
    #allocation9 [shape = 's32[1]{0}', space=sflag, size = 0x4, scoped, tag = 'scoped memory for tpu_custom_call.1']
    #allocation10 [shape = 'u8[16384]{0}', space=vmem, size = 0x4000, scoped, tag = 'input window, operand 2, single buffered']
    #allocation11 [shape = 'u8[8192]{0}', space=vmem, size = 0x2000, scoped, tag = 'input window, operand 3, single buffered']
    #allocation12 [shape = 's32[1]{0}', space=sflag, size = 0x4, scoped, tag = 'scoped memory for tpu_custom_call.1']
    #allocation13 [shape = 'u8[4096]{0}', space=vmem, size = 0x1000, scoped, tag = 'output window, operand 0, single buffered']
    %9 = vsyncpa [#allocation6], 0
    %10 = vsyncpa [#allocation9], 0
    %11 = vsyncpa [#allocation12], 0
    %12 = vsyncpa [#allocation7], 0
    // Predicated region
    $region2: #{tpu_custom_call.1} parent=1 // pred_check
      _
    $region3: #{tpu_custom_call.1} parent=1 // pred_check_branch
      %14 = sbr.rel (0) target = $region5
    $region4: #{tpu_custom_call.1} parent=1 // pred_region
      %s16 = ssub.s32 128, 128
      %17 = vsyncadd [#allocation6], %s16
      %s19 = sshll.u32 [#allocation5], 4
      %s20 = int_to_ptr.vmem [resolvable:$true] %s19
      %22 = dma.hbm_to_vmem [thread:$0]  %s0, 128, %s20, [#allocation6]
    $region5: #{tpu_custom_call.1} parent=1 // pred_fallthru
      _
    // Predicated region
    $region6: #{tpu_custom_call.1} parent=1 // pred_check
      _
    $region7: #{tpu_custom_call.1} parent=1 // pred_check_branch
      %24 = sbr.rel (0) target = $region9
    $region8: #{tpu_custom_call.1} parent=1 // pred_region
      %s26 = ssub.s32 128, 128
      %27 = vsyncadd [#allocation9], %s26
      %s29 = sshll.u32 [#allocation8], 4
      %s30 = int_to_ptr.vmem [resolvable:$true] %s29
      %32 = dma.hbm_to_vmem [thread:$0]  %s1, 128, %s30, [#allocation9]
    $region9: #{tpu_custom_call.1} parent=1 // pred_fallthru
      _
    // Predicated region
    $region10: #{tpu_custom_call.1} parent=1 // pred_check
      _
    $region11: #{tpu_custom_call.1} parent=1 // pred_check_branch
      %34 = sbr.rel (0) target = $region13
    $region12: #{tpu_custom_call.1} parent=1 // pred_region
      %s35 = sadd.s32 0, 0
      %p36 = scmp.lt.s32.totalorder %s35, 0
      %s37 = scalar_select %p36, %s35, 0
      %s39 = ssub.s32 512, 512
      %40 = vsyncadd [#allocation9], %s39
      %s41 = smul.addr %s37, 128
      %s42 = scalar_lea.hbm %s2, %s41
      %s43 = sshll.u32 [#allocation10], 4
      %s44 = int_to_ptr.vmem [resolvable:$true] %s43
      %49 = dma.hbm_to_vmem [thread:$0]  %s42, 512, %s44, [#allocation9], 128, 128, 8
    $region13: #{tpu_custom_call.1} parent=1 // pred_fallthru
      _
    // Predicated region
    $region14: #{tpu_custom_call.1} parent=1 // pred_check
      _
    $region15: #{tpu_custom_call.1} parent=1 // pred_check_branch
      %51 = sbr.rel (0) target = $region17
    $region16: #{tpu_custom_call.1} parent=1 // pred_region
      %s52 = sadd.s32 0, 0
      %p53 = scmp.lt.s32.totalorder %s52, 0
      %s54 = scalar_select %p53, %s52, 0
      %s56 = ssub.s32 256, 256
      %57 = vsyncadd [#allocation12], %s56
      %s58 = smul.addr %s54, 128
      %s59 = scalar_lea.hbm %s3, %s58
      %s60 = sshll.u32 [#allocation11], 4
      %s61 = int_to_ptr.vmem [resolvable:$true] %s60
      %66 = dma.hbm_to_vmem [thread:$0]  %s59, 256, %s61, [#allocation12], 128, 128, 8
    $region17: #{tpu_custom_call.1} parent=1 // pred_fallthru
      _
    // Predicated region
    $region18: #{tpu_custom_call.1} parent=1 // pred_check
      _
    $region19: #{tpu_custom_call.1} parent=1 // pred_check_branch
      %68 = sbr.rel (0) target = $region21
    $region20: #{tpu_custom_call.1} parent=1 // pred_region
      %69 = dma.done [#allocation6], 128
    $region21: #{tpu_custom_call.1} parent=1 // pred_fallthru
      _
    // Predicated region
    $region22: #{tpu_custom_call.1} parent=1 // pred_check
      _
    $region23: #{tpu_custom_call.1} parent=1 // pred_check_branch
      %71 = sbr.rel (0) target = $region25
    $region24: #{tpu_custom_call.1} parent=1 // pred_region
      %72 = dma.done [#allocation9], 128
    $region25: #{tpu_custom_call.1} parent=1 // pred_fallthru
      _
    // Predicated region
    $region26: #{tpu_custom_call.1} parent=1 // pred_check
      _
    $region27: #{tpu_custom_call.1} parent=1 // pred_check_branch
      %74 = sbr.rel (0) target = $region29
    $region28: #{tpu_custom_call.1} parent=1 // pred_region
      %75 = dma.done [#allocation9], 512
    $region29: #{tpu_custom_call.1} parent=1 // pred_fallthru
      _
    // Predicated region
    $region30: #{tpu_custom_call.1} parent=1 // pred_check
      _
    $region31: #{tpu_custom_call.1} parent=1 // pred_check_branch
      %77 = sbr.rel (0) target = $region33
    $region32: #{tpu_custom_call.1} parent=1 // pred_region
      %78 = dma.done [#allocation12], 256
    $region33: #{tpu_custom_call.1} parent=1 // pred_fallthru
      _
    %s79 = sadd.s32 0, 0
    %p80 = scmp.lt.s32.totalorder %s79, 0
    %s81 = scalar_select %p80, %s79, 0
    %s82 = sadd.s32 0, 0
    %p83 = scmp.lt.s32.totalorder %s82, 0
    %s84 = scalar_select %p83, %s82, 0
    %p85 = scmp.eq.s32.totalorder 0, 0
    // Predicated region
    $region34: #{tpu_custom_call.1} parent=1 // pred_check
      %p86 = pneg %p85
    $region35: #{tpu_custom_call.1} parent=1 // pred_check_branch
      %88 = sbr.rel (%p86) target = $region37
    $region36: #{tpu_custom_call.1} parent=1 // pred_region
      %vm89 = vcmask 523264
      %90 = vst.msk [vmem:[#allocation4] sm:$0xff] %vm89, 0.0
      %v91 = vld [vmem:[#allocation5] sm:$0xff]
      %v92 = vmul.f32 %v91, 0.5
      %vm93 = vcmask 261120
      %94 = vst.msk [vmem:[#allocation2] sm:$0xff] %vm93, %v92
      %v95 = vld [vmem:[#allocation8] sm:$0xff]
      %vm96 = vcmask 130048
      %97 = vst.msk [vmem:[#allocation3] sm:$0xff] %vm96, %v95
    $region37: #{tpu_custom_call.1} parent=1 // pred_fallthru
      _
    %v98 = vld [vmem:[#allocation2] sm:$0xff]
    %v99 = vld [vmem:[#allocation10] sm:$0xff]
    %v100 = vld [vmem:[#allocation10 + $0x8] sm:$0xff]
    %v101 = vld [vmem:[#allocation10 + $0x10] sm:$0xff]
    %v102 = vld [vmem:[#allocation10 + $0x18] sm:$0xff]
    %vm103 = vcmask 261120
    %v105 = vsel %vm103, %v98, 0
    %107 = vmatprep.subr.mxu0 0.0
    %108 = vmatpush1.msra.mxu0 %v99
    %109 = vmatprep.subr.mxu0 0.0
    %110 = vmatpush1.msra.mxu0 %v100
    %111 = vmatprep.subr.mxu0 0.0
    %112 = vmatpush1.msra.mxu0 %v101
    %113 = vmatprep.subr.mxu0 0.0
    %114 = vmatpush1.msra.mxu0 %v102
    %115 = vmatprep.subr.mxu0 0.0
    %116 = vmatpush1.msra.mxu0 0.0
    %117 = vmatprep.subr.mxu0 0.0
    %118 = vmatpush1.msra.mxu0 0.0
    %119 = vmatprep.subr.mxu0 0.0
    %120 = vmatpush1.msra.mxu0 0.0
    %121 = vmatprep.subr.mxu0 0.0
    %122 = vmatpush1.msra.mxu0 0.0
    %123 = vmatprep.subr.mxu0 0.0
    %124 = vmatpush1.msra.mxu0 0.0
    %125 = vmatprep.subr.mxu0 0.0
    %126 = vmatpush1.msra.mxu0 0.0
    %127 = vmatprep.subr.mxu0 0.0
    %128 = vmatpush1.msra.mxu0 0.0
    %129 = vmatprep.subr.mxu0 0.0
    %130 = vmatpush1.msra.mxu0 0.0
    %131 = vmatprep.subr.mxu0 0.0
    %132 = vmatpush1.msra.mxu0 0.0
    %133 = vmatprep.subr.mxu0 0.0
    %134 = vmatpush1.msra.mxu0 0.0
    %135 = vmatprep.subr.mxu0 0.0
    %136 = vmatpush1.msra.mxu0 0.0
    %137 = vmatprep.subr.mxu0 0.0
    %138 = vmatpush1.msra.mxu0 0.0
    %139 = vmatprep.subr.mxu0 0.0
    %140 = vmatpush1.msra.mxu0 0.0
    %141 = vmatprep.subr.mxu0 0.0
    %142 = vmatpush1.msra.mxu0 0.0
    %143 = vmatprep.subr.mxu0 0.0
    %144 = vmatpush1.msra.mxu0 0.0
    %145 = vmatprep.subr.mxu0 0.0
    %146 = vmatpush1.msra.mxu0 0.0
    %147 = vmatprep.subr.mxu0 0.0
    %148 = vmatpush1.msra.mxu0 0.0
    %149 = vmatprep.subr.mxu0 0.0
    %150 = vmatpush1.msra.mxu0 0.0
    %151 = vmatprep.subr.mxu0 0.0
    %152 = vmatpush1.msra.mxu0 0.0
    %153 = vmatprep.subr.mxu0 0.0
    %154 = vmatpush1.msra.mxu0 0.0
    %155 = vmatprep.subr.mxu0 0.0
    %156 = vmatpush1.msra.mxu0 0.0
    %157 = vmatprep.subr.mxu0 0.0
    %158 = vmatpush1.msra.mxu0 0.0
    %159 = vmatprep.subr.mxu0 0.0
    %160 = vmatpush1.msra.mxu0 0.0
    %161 = vmatprep.subr.mxu0 0.0
    %162 = vmatpush1.msra.mxu0 0.0
    %163 = vmatprep.subr.mxu0 0.0
    %164 = vmatpush1.msra.mxu0 0.0
    %165 = vmatprep.subr.mxu0 0.0
    %166 = vmatpush1.msra.mxu0 0.0
    %167 = vmatprep.subr.mxu0 0.0
    %168 = vmatpush1.msra.mxu0 0.0
    %169 = vmatprep.subr.mxu0 0.0
    %170 = vmatpush1.msra.mxu0 0.0
    %171 = vmatprep.mubr.f32.mxu0 0.0
    %172 = vmatmul.mubr.f32.gmra.mrb[0].mxu0 %v105
    %v173 = vpop.f32.mrb[0].mxu0
    %v174 = vadd.f32 0.0, %v173
    %v175 = vpop.f32.mrb[0].mxu0
    %176 = vdwg.mxu0
    %v177 = vld [vmem:[#allocation3] sm:$0xff]
    %v178 = vld [vmem:[#allocation11] sm:$0xff]
    %v179 = vld [vmem:[#allocation11 + $0x8] sm:$0xff]
    %vm180 = vcmask 130048
    %v182 = vsel %vm180, %v177, 0
    %184 = vmatprep.subr.mxu0 0.0
    %185 = vmatpush1.msra.mxu0 %v178
    %186 = vmatprep.subr.mxu0 0.0
    %187 = vmatpush1.msra.mxu0 %v179
    %188 = vmatprep.subr.mxu0 0.0
    %189 = vmatpush1.msra.mxu0 0.0
    %190 = vmatprep.subr.mxu0 0.0
    %191 = vmatpush1.msra.mxu0 0.0
    %192 = vmatprep.subr.mxu0 0.0
    %193 = vmatpush1.msra.mxu0 0.0
    %194 = vmatprep.subr.mxu0 0.0
    %195 = vmatpush1.msra.mxu0 0.0
    %196 = vmatprep.subr.mxu0 0.0
    %197 = vmatpush1.msra.mxu0 0.0
    %198 = vmatprep.subr.mxu0 0.0
    %199 = vmatpush1.msra.mxu0 0.0
    %200 = vmatprep.subr.mxu0 0.0
    %201 = vmatpush1.msra.mxu0 0.0
    %202 = vmatprep.subr.mxu0 0.0
    %203 = vmatpush1.msra.mxu0 0.0
    %204 = vmatprep.subr.mxu0 0.0
    %205 = vmatpush1.msra.mxu0 0.0
    %206 = vmatprep.subr.mxu0 0.0
    %207 = vmatpush1.msra.mxu0 0.0
    %208 = vmatprep.subr.mxu0 0.0
    %209 = vmatpush1.msra.mxu0 0.0
    %210 = vmatprep.subr.mxu0 0.0
    %211 = vmatpush1.msra.mxu0 0.0
    %212 = vmatprep.subr.mxu0 0.0
    %213 = vmatpush1.msra.mxu0 0.0
    %214 = vmatprep.subr.mxu0 0.0
    %215 = vmatpush1.msra.mxu0 0.0
    %216 = vmatprep.subr.mxu0 0.0
    %217 = vmatpush1.msra.mxu0 0.0
    %218 = vmatprep.subr.mxu0 0.0
    %219 = vmatpush1.msra.mxu0 0.0
    %220 = vmatprep.subr.mxu0 0.0
    %221 = vmatpush1.msra.mxu0 0.0
    %222 = vmatprep.subr.mxu0 0.0
    %223 = vmatpush1.msra.mxu0 0.0
    %224 = vmatprep.subr.mxu0 0.0
    %225 = vmatpush1.msra.mxu0 0.0
    %226 = vmatprep.subr.mxu0 0.0
    %227 = vmatpush1.msra.mxu0 0.0
    %228 = vmatprep.subr.mxu0 0.0
    %229 = vmatpush1.msra.mxu0 0.0
    %230 = vmatprep.subr.mxu0 0.0
    %231 = vmatpush1.msra.mxu0 0.0
    %232 = vmatprep.subr.mxu0 0.0
    %233 = vmatpush1.msra.mxu0 0.0
    %234 = vmatprep.subr.mxu0 0.0
    %235 = vmatpush1.msra.mxu0 0.0
    %236 = vmatprep.subr.mxu0 0.0
    %237 = vmatpush1.msra.mxu0 0.0
    %238 = vmatprep.subr.mxu0 0.0
    %239 = vmatpush1.msra.mxu0 0.0
    %240 = vmatprep.subr.mxu0 0.0
    %241 = vmatpush1.msra.mxu0 0.0
    %242 = vmatprep.subr.mxu0 0.0
    %243 = vmatpush1.msra.mxu0 0.0
    %244 = vmatprep.subr.mxu0 0.0
    %245 = vmatpush1.msra.mxu0 0.0
    %246 = vmatprep.subr.mxu0 0.0
    %247 = vmatpush1.msra.mxu0 0.0
    %248 = vmatprep.mubr.f32.mxu0 0.0
    %249 = vmatmul.mubr.f32.gmra.mrb[0].mxu0 %v182
    %v250 = vpop.f32.mrb[0].mxu0
    %v251 = vadd.f32 0.0, %v250
    %v252 = vpop.f32.mrb[0].mxu0
    %253 = vdwg.mxu0
    %vm254 = vcmp.gt.f32.partialorder %v251, 0.0
    %v255 = vsel %vm254, 1, 0
    %v256 = vcvt.s32.f32 %v255
    %v257 = vand.u32 2147483647, %v174
    %v258 = vsub.f32 0.0, %v257
    %v259 = vmul.f32 %v258, 1.442695
    %v260 = vpow.pop %v259
    %v261 = vadd.f32 %v260, 1.0
    %v262 = vlog2.pop %v261
    %v263 = vmul.f32 %v262, 0.6931472
    %v264 = vmul.f32 -0.5, %v260
    %v265 = vadd.f32 %v264, 1.0
    %v266 = vmul.f32 %v265, %v260
    %v267 = vand.u32 2147483647, %v260
    %vm268 = vcmp.lt.f32.partialorder %v267, 0.0004427343
    %v269 = vsel %vm268, %v266, %v263
    %v270 = vmax.f32 %v174, 0.0
    %v271 = vadd.f32 %v269, %v270
    %v272 = vmul.f32 %v256, %v174
    %v273 = vsub.f32 %v271, %v272
    %v274 = vld [vmem:[#allocation4] sm:$0xff]
    %v275 = vadd.f32 %v274, %v273
    %vm276 = vcmask 523264
    %277 = vst.msk [vmem:[#allocation4] sm:$0xff] %vm276, %v275
    // Predicated region
    $region38: #{tpu_custom_call.1} parent=1 // pred_check
      %p278 = pneg %p85
    $region39: #{tpu_custom_call.1} parent=1 // pred_check_branch
      %280 = sbr.rel (%p278) target = $region41
    $region40: #{tpu_custom_call.1} parent=1 // pred_region
      %v281 = vld [vmem:[#allocation4] sm:$0xff]
      %v282 = vsel %vm276, %v281, 0.0
      %283 = vadd.xlane.f32.xlu0 %v282
      %v284 = vpop.xlane.xlu0 %283
      %v285 = vrot.slane %v284, 4
      %v286 = vadd.f32 %v284, %v285
      %v287 = vrot.slane %v286, 2
      %v288 = vadd.f32 %v286, %v287
      %v289 = vrot.slane %v288, 1
      %v290 = vadd.f32 %v288, %v289
      %s291 = vtos %v290
      %v292 = vrcp.pop 512.0
      %s293 = vtos %v292
      %s294 = smul.f32 %s291, %s293
      %v295 = vld [vmem:[#allocation5] sm:$0xff]
      %v296 = vand.u32 2147483647, %v295
      %v297 = vsub.f32 %v296, 1.0
      %v298 = vand.u32 2147483647, %v297
      %v299 = vmul.f32 %v298, -2.0
      %v300 = vmul.f32 %v299, 1.442695
      %v301 = vpow.pop %v300
      %v302 = vadd.f32 %v301, 1.0
      %v303 = vlog2.pop %v302
      %v304 = vmul.f32 %v303, 0.6931472
      %v305 = vmul.f32 -0.5, %v301
      %v306 = vadd.f32 %v305, 1.0
      %v307 = vmul.f32 %v306, %v301
      %v308 = vand.u32 2147483647, %v301
      %vm309 = vcmp.lt.f32.partialorder %v308, 0.0004427343
      %v310 = vsel %vm309, %v307, %v304
      %v311 = vadd.f32 %v298, %v310
      %v312 = vsub.f32 %v311, 0.6931472
      %v313 = vsel %vm103, %v312, 0.0
      %314 = vadd.xlane.f32.xlu0 %v313
      %v315 = vpop.xlane.xlu0 %314
      %v316 = vrot.slane %v315, 4
      %v317 = vadd.f32 %v315, %v316
      %v318 = vrot.slane %v317, 2
      %v319 = vadd.f32 %v317, %v318
      %v320 = vrot.slane %v319, 1
      %v321 = vadd.f32 %v319, %v320
      %s322 = vtos %v321
      %v323 = vrcp.pop 256.0
      %s324 = vtos %v323
      %s325 = smul.f32 %s322, %s324
      %s326 = smul.f32 %s325, 0.1
      %p327 = scmp.eq.s32.totalorder 0, 0
      %s328 = scalar_select %p327, %s326, 0.0
      %s329 = sadd.f32 %s294, %s328
      %v330 = vstv %s329
      %331 = vst [vmem:[#allocation13] sm:$0xff] %v330
    $region41: #{tpu_custom_call.1} parent=1 // pred_fallthru
      _
    // Predicated region
    $region42: #{tpu_custom_call.1} parent=1 // pred_check
      _
    $region43: #{tpu_custom_call.1} parent=1 // pred_check_branch
      %333 = sbr.rel (0) target = $region45
    $region44: #{tpu_custom_call.1} parent=1 // pred_region
      %s335 = ssub.s32 128, 128
      %336 = vsyncadd [#allocation7], %s335
      %s338 = sshll.u32 [#allocation13], 4
      %s339 = int_to_ptr.vmem [resolvable:$true] %s338
      %341 = dma.vmem_to_hbm [thread:$0]  %s339, 128, %s4, [#allocation7]
    $region45: #{tpu_custom_call.1} parent=1 // pred_fallthru
      _
    // Predicated region
    $region46: #{tpu_custom_call.1} parent=1 // pred_check
      _
    $region47: #{tpu_custom_call.1} parent=1 // pred_check_branch
      %343 = sbr.rel (0) target = $region49
    $region48: #{tpu_custom_call.1} parent=1 // pred_region
      %344 = dma.done [#allocation7], 128
    $region49: #{tpu_custom_call.1} parent=1 // pred_fallthru
      _
    %345 = vsyncpa [#allocation6], 1
    %346 = vsyncpa [#allocation9], 1
    %347 = vsyncpa [#allocation12], 1
    %348 = vsyncpa [#allocation7], 1

</llo_original>
